<compile_context>
chip_gen: v7x
topology: tpu7x:2x2x1
jax: 0.10.0
libtpu: 0.0.40
codegen_flags: <defaults>
</compile_context>

<pallas_src>
import jax
import jax.numpy as jnp
from jax.experimental import pallas as pl
from jax.experimental.pallas import tpu as pltpu


def _regression_head_kernel(x_ref, mask_ref, wf_ref, mc_ref, bias_ref, out_ref):
    """One B-tile of the fused forward.

    x_ref:    (TB, T*H) VMEM  -- raw activations, time*hidden flattened (lane-dense)
    mask_ref: (TB, T)   VMEM
    wf_ref:   (1, T*H)  VMEM  -- fused weight a_t * w_h in x.dtype (resident block)
    mc_ref:   (1, T)    VMEM  -- mask-correction coeffs -1e6 * sum_h(w_h) * a_t (f32)
    bias_ref: (1,)      SMEM  -- linear bias
    out_ref:  (TB, 1)   VMEM
    """
    # Weighted contraction over the flattened T*H axis.  Multiply in the input
    # dtype (bf16 VALU on v6e/v7x -> fewer VPU slot-ops than upcast-then-mul),
    # accumulate the reduce in f32.
    prod = x_ref[...] * wf_ref[...]                                       # (TB, T*H)
    contrib = jnp.sum(prod.astype(jnp.float32), axis=-1, keepdims=True)   # (TB, 1)
    # Mask-penalty correction computed from the (tiny) mask block alone, in f32.
    m = mask_ref[...].astype(jnp.float32)                                 # (TB, T)
    corr = jnp.sum((1.0 - m) * mc_ref[...], axis=-1, keepdims=True)       # (TB, 1)
    out_ref[...] = contrib + corr + bias_ref[0]


def _round_up(n, m):
    return ((n + m - 1) // m) * m


def _choose_tile_and_vmem(B, T, TH, x_itemsize, mask_itemsize, block_b):
    """Pick a B-tile that (a) fits a per-generation VMEM budget and (b) keeps the
    1-D grid at >=2 (target >=8) steps for TC sharding + DMA/compute overlap."""
    try:
        vmem_bytes = int(pltpu.get_tpu_info().vmem_capacity_bytes)  # 64 MiB v7x, 128 MiB v5e/v6e
    except Exception:
        vmem_bytes = 64 << 20                                        # conservative (v7x) fallback
    budget = int(vmem_bytes * 0.65)

    # Every BlockSpec operand is double-buffered by the pipeline, including the
    # constant-index ("resident") weight blocks.
    resident_bytes = 2 * (TH * x_itemsize + T * 4)                   # wf (x dtype) + mc (f32)
    per_row_bytes = 2 * (TH * x_itemsize + T * mask_itemsize + 4)    # x + mask + out per B-row
    tb_vmem = max(8, ((budget - resident_bytes) // max(per_row_bytes, 1)) // 8 * 8)

    if B <= 8:
        tb = B                                                       # block == full dim, legal
    else:
        tb = min(block_b, tb_vmem)
        # Cap TB so the grid has several steps (>=2, ideally >=8) when B is big.
        target_steps = min(8, max(2, B // 8))
        tb_for_steps = max(8, _round_up(pl.cdiv(B, target_steps), 8))
        tb = max(8, (min(tb, tb_for_steps) // 8) * 8)

    vmem_needed = resident_bytes + tb * per_row_bytes + (4 << 20)    # +4 MiB compiler headroom
    vmem_limit = int(min(vmem_bytes * 0.8, max(vmem_needed, 32 << 20)))
    return tb, vmem_limit


def regression_head(x, mask, linear_w, linear_b, weight_ema=0.5, weight_mean=0.5,
                    block_b=512):
    """x: (B, T, H), mask: (B, T). Returns (B,) f32."""
    B, T, H = x.shape
    TH = T * H

    # EMA over time is a fixed linear combination: ema = sum_t c_t * x[:, t]
    #   c_0 = 0.9^(T-1),  c_t = 0.1 * 0.9^(T-1-t) for t >= 1
    decay = 0.9 ** jnp.arange(T - 1, -1, -1, dtype=jnp.float32)
    c = decay * jnp.where(jnp.arange(T) == 0, 1.0, 0.1)
    # combined = weight_ema * ema + weight_mean * mean  ->  per-timestep coeff a_t
    a = weight_ema * c + weight_mean / T                                 # (T,)

    w_vec = jnp.asarray(linear_w, dtype=jnp.float32).reshape(H)          # torch weight is (1, H)
    w_fused = (a[:, None] * w_vec[None, :]).reshape(1, TH).astype(x.dtype)  # (1, T*H), x.dtype
    # Penalty contribution: -1e6 * sum_h(w_h) * sum_t a_t * (1 - mask[b, t]).
    mask_coeff = (-1000000.0 * jnp.sum(w_vec) * a).reshape(1, T)         # (1, T), f32
    bias = jnp.asarray(linear_b, dtype=jnp.float32).reshape(1)

    # Keep input dtype (no wrapper-side f32 copy in HBM); flatten for lane density.
    x_flat = x.reshape(B, TH)
    mask2d = mask.reshape(B, T)

    TB, vmem_limit = _choose_tile_and_vmem(
        B, T, TH, x.dtype.itemsize, mask2d.dtype.itemsize, block_b)
    grid = (pl.cdiv(B, TB),)

    out = pl.pallas_call(
        _regression_head_kernel,
        out_shape=jax.ShapeDtypeStruct((B, 1), jnp.float32),
        grid=grid,
        in_specs=[
            pl.BlockSpec((TB, TH), lambda i: (i, 0)),            # x: streamed, double-buffered
            pl.BlockSpec((TB, T), lambda i: (i, 0)),             # mask
            pl.BlockSpec((1, TH), lambda i: (0, 0)),             # fused weight (resident)
            pl.BlockSpec((1, T), lambda i: (0, 0)),              # mask coeffs (resident)
            pl.BlockSpec(memory_space=pltpu.MemorySpace.SMEM),   # bias scalar
        ],
        out_specs=pl.BlockSpec((TB, 1), lambda i: (i, 0)),
        compiler_params=pltpu.CompilerParams(
            dimension_semantics=("parallel",),                   # shards B-steps over v7x's 2 TCs
            vmem_limit_bytes=vmem_limit),
    )(x_flat, mask2d, w_fused, mask_coeff, bias)
    return out[:, 0]


def _reference(x, mask, linear_w, linear_b, weight_ema, weight_mean):
    """Pure-JAX reference matching the PyTorch forward exactly (serial EMA, penalty mixed in)."""
    pen = (1.0 - mask[..., None]) * 1000000.0
    xm = x.astype(jnp.float32) - pen
    ema = xm[:, 0]
    for t in range(1, xm.shape[1]):
        ema = 0.1 * xm[:, t] + (1 - 0.1) * ema
    x_mean = jnp.mean(xm, axis=1)
    comb = weight_ema * ema + weight_mean * x_mean
    return comb @ jnp.asarray(linear_w, jnp.float32).reshape(-1) + linear_b


if __name__ == "__main__":
    key = jax.random.PRNGKey(0)
    kx, km, kw, kx2, km2 = jax.random.split(key, 5)

    # Deterministic synthetic parameters (module __init__ only fixes shapes).
    T, H = 8, 32
    linear_w = jax.random.normal(kw, (1, H), dtype=jnp.float32) * 0.1    # nn.Linear(H, 1).weight
    linear_b = jnp.float32(0.05)                                         # nn.Linear(H, 1).bias
    weight_ema = 0.5
    weight_mean = 0.5

    # Case 1: tiny batch (single grid step).
    B = 2
    x = jax.random.normal(kx, (B, T, H), dtype=jnp.float32)
    mask = (jax.random.uniform(km, (B, T)) > 0.3).astype(jnp.float32)
    out = jax.block_until_ready(
        regression_head(x, mask, linear_w, linear_b, weight_ema, weight_mean))
    ref = _reference(x, mask, linear_w, linear_b, weight_ema, weight_mean)
    assert out.shape == (B,)
    # The naive reference mixes O(1e6) penalties with O(1) signal (catastrophic
    # cancellation ~0.1 absolute); the kernel computes the penalty term exactly
    # in closed form, so allow a small absolute slack on top of rtol.
    assert jnp.allclose(out, ref, rtol=1e-3, atol=0.5), (out, ref)

    # Case 2: B not a multiple of the tile -> multi-step grid + padded last block.
    B2 = 100
    x2 = jax.random.normal(kx2, (B2, T, H), dtype=jnp.float32)
    mask2 = (jax.random.uniform(km2, (B2, T)) > 0.3).astype(jnp.float32)
    out2 = jax.block_until_ready(
        regression_head(x2, mask2, linear_w, linear_b, weight_ema, weight_mean))
    ref2 = _reference(x2, mask2, linear_w, linear_b, weight_ema, weight_mean)
    assert out2.shape == (B2,)
    assert jnp.allclose(out2, ref2, rtol=1e-3, atol=0.5), (out2, ref2)

    print("KERNEL_OK")
</pallas_src>

<mosaic_0001>
module attributes {stable_mosaic.version = 11 : i64} {
  func.func @_regression_head_kernel(%arg0: i32, %arg1: memref<2x256xf32, #tpu.memory_space<vmem>>, %arg2: memref<2x8xf32, #tpu.memory_space<vmem>>, %arg3: memref<1x256xf32, #tpu.memory_space<vmem>>, %arg4: memref<1x8xf32, #tpu.memory_space<vmem>>, %arg5: memref<1xf32, #tpu.memory_space<smem>>, %arg6: memref<2x1xf32, #tpu.memory_space<vmem>>) attributes {dimension_semantics = [#tpu.dimension_semantics<parallel>], iteration_bounds = array<i64: 1>, scalar_prefetch = 0 : i64, scratch_operands = 0 : i64, tpu.core_type = #tpu.core_type<tc>, window_params = [{transform_indices = @transform_0, window_bounds = array<i64: 2, 256>}, {transform_indices = @transform_1, window_bounds = array<i64: 2, 8>}, {pipeline_mode = #tpu.pipeline_mode<synchronous>, transform_indices = @transform_2, window_bounds = array<i64: 1, 256>}, {pipeline_mode = #tpu.pipeline_mode<synchronous>, transform_indices = @transform_3, window_bounds = array<i64: 1, 8>}, {transform_indices = @transform_4, window_bounds = array<i64: 1>}, {transform_indices = @transform_5, window_bounds = array<i64: 2, 1>}]} {
    %c0 = arith.constant 0 : index
    %c0_0 = arith.constant 0 : index
    %0 = vector.load %arg1[%c0, %c0_0] : memref<2x256xf32, #tpu.memory_space<vmem>>, vector<2x256xf32>
    %c0_1 = arith.constant 0 : index
    %c0_2 = arith.constant 0 : index
    %1 = vector.load %arg3[%c0_1, %c0_2] : memref<1x256xf32, #tpu.memory_space<vmem>>, vector<1x256xf32>
    %2 = vector.broadcast %1 : vector<1x256xf32> to vector<2x256xf32>
    %3 = arith.mulf %0, %2 : vector<2x256xf32>
    %cst = arith.constant dense<0.000000e+00> : vector<2xf32>
    %4 = vector.multi_reduction <add>, %3, %cst [1] : vector<2x256xf32> to vector<2xf32>
    %5 = vector.shape_cast %4 : vector<2xf32> to vector<2x1xf32>
    %c0_3 = arith.constant 0 : index
    %c0_4 = arith.constant 0 : index
    %6 = vector.load %arg2[%c0_3, %c0_4] : memref<2x8xf32, #tpu.memory_space<vmem>>, vector<2x8xf32>
    %cst_5 = arith.constant 1.000000e+00 : f32
    %7 = vector.broadcast %cst_5 : f32 to vector<2x8xf32>
    %8 = arith.subf %7, %6 : vector<2x8xf32>
    %c0_6 = arith.constant 0 : index
    %c0_7 = arith.constant 0 : index
    %9 = vector.load %arg4[%c0_6, %c0_7] : memref<1x8xf32, #tpu.memory_space<vmem>>, vector<1x8xf32>
    %10 = vector.broadcast %9 : vector<1x8xf32> to vector<2x8xf32>
    %11 = arith.mulf %8, %10 : vector<2x8xf32>
    %cst_8 = arith.constant dense<0.000000e+00> : vector<2xf32>
    %12 = vector.multi_reduction <add>, %11, %cst_8 [1] : vector<2x8xf32> to vector<2xf32>
    %13 = vector.shape_cast %12 : vector<2xf32> to vector<2x1xf32>
    %14 = arith.addf %5, %13 : vector<2x1xf32>
    %c0_9 = arith.constant 0 : index
    %15 = memref.load %arg5[%c0_9] : memref<1xf32, #tpu.memory_space<smem>>
    %16 = vector.broadcast %15 : f32 to vector<2x1xf32>
    %17 = arith.addf %14, %16 : vector<2x1xf32>
    %c0_10 = arith.constant 0 : index
    %c0_11 = arith.constant 0 : index
    %18 = vector.load %arg6[%c0_10, %c0_11] : memref<2x1xf32, #tpu.memory_space<vmem>>, vector<2x1xf32>
    tpu.vector_store %arg6[%c0_10, %c0_11], %17 {strides = array<i32>} : memref<2x1xf32, #tpu.memory_space<vmem>>, vector<2x1xf32>,
    return
  }
  func.func @transform_0(%arg0: i32) -> (i32, i32) {
    %c0_i32 = arith.constant 0 : i32
    %c0_i32_0 = arith.constant 0 : i32
    return %arg0, %c0_i32 : i32, i32
  }
  func.func @transform_1(%arg0: i32) -> (i32, i32) {
    %c0_i32 = arith.constant 0 : i32
    %c0_i32_0 = arith.constant 0 : i32
    return %arg0, %c0_i32 : i32, i32
  }
  func.func @transform_2(%arg0: i32) -> (i32, i32) {
    %c0_i32 = arith.constant 0 : i32
    %c0_i32_0 = arith.constant 0 : i32
    %c0_i32_1 = arith.constant 0 : i32
    return %c0_i32, %c0_i32_0 : i32, i32
  }
  func.func @transform_3(%arg0: i32) -> (i32, i32) {
    %c0_i32 = arith.constant 0 : i32
    %c0_i32_0 = arith.constant 0 : i32
    %c0_i32_1 = arith.constant 0 : i32
    return %c0_i32, %c0_i32_0 : i32, i32
  }
  func.func @transform_4(%arg0: i32) -> i32 {
    %c0_i32 = arith.constant 0 : i32
    %c0_i32_0 = arith.constant 0 : i32
    return %c0_i32 : i32
  }
  func.func @transform_5(%arg0: i32) -> (i32, i32) {
    %c0_i32 = arith.constant 0 : i32
    %c0_i32_0 = arith.constant 0 : i32
    return %arg0, %c0_i32 : i32, i32
  }
}

</mosaic_0001>

<llo_original>
// kernel: tpu_custom_call.1
$region0: #{tpu_custom_call.1}
  #allocation0 [shape = 'u32[]', space=smem, size = 0x4, offset = 0x4, fixed_abs, tag = 'smem constant byte address 0x4 - core index']
  #allocation1 [shape = 'u32[144,128]{1,0:T(1,128)}', space=vmem, size = 0x12000, scoped, tag = 'internal scratch']
  #allocation2 [shape = 'f32[1]{0:T(128)S(6)}', space=smem, size = 0x200, scoped, tag = 'scoped memory for tpu_custom_call.1']
  %s0 = inlined_call_operand.hbm [shape: f32[2,256], index: 0, kind: input, shape index: {}]
  %s1 = inlined_call_operand.vmem [shape: f32[2,8], index: 1, kind: input, shape index: {}]
  %s2 = inlined_call_operand.vmem [shape: f32[1,256], index: 2, kind: input, shape index: {}]
  %s3 = inlined_call_operand.vmem [shape: f32[1,8], index: 3, kind: input, shape index: {}]
  %s4 = inlined_call_operand.<no memory space> [shape: f32[1], index: 4, kind: input, shape index: {}]
  %s5 = inlined_call_operand.vmem [shape: f32[2,1], index: 5, kind: output, shape index: {}]
  %s6 = sld [smem:[#allocation0]]
  $region34: #{tpu_custom_call.1} parent=0
    _
  %s8 = ssub.s32 1, %s6
  %s9 = scalar_select 0, %s8, %s6
  %10 = sst [smem:[#allocation2]] %s4
  $region1: #{tpu_custom_call.1} parent=0
    #allocation3 [shape = 'u8[2048]{0}', space=vmem, size = 0x800, scoped, tag = 'input window, operand 0, single buffered']
    #allocation4 [shape = 's32[1]{0}', space=sflag, size = 0x4, scoped, tag = 'scoped memory for tpu_custom_call.1']
    %11 = vsyncpa [#allocation4], 0
    // Predicated region
    $region2: #{tpu_custom_call.1} parent=1 // pred_check
      _
    $region3: #{tpu_custom_call.1} parent=1 // pred_check_branch
      %13 = sbr.rel (0) target = $region5
    $region4: #{tpu_custom_call.1} parent=1 // pred_region
      %s15 = ssub.s32 64, 64
      %16 = vsyncadd [#allocation4], %s15
      %s18 = sshll.u32 [#allocation3], 4
      %s19 = int_to_ptr.vmem [resolvable:$true] %s18
      %21 = dma.hbm_to_vmem [thread:$0]  %s0, 64, %s19, [#allocation4]
    $region5: #{tpu_custom_call.1} parent=1 // pred_fallthru
      _
    // Predicated region
    $region6: #{tpu_custom_call.1} parent=1 // pred_check
      _
    $region7: #{tpu_custom_call.1} parent=1 // pred_check_branch
      %23 = sbr.rel (0) target = $region9
    $region8: #{tpu_custom_call.1} parent=1 // pred_region
      _
    $region9: #{tpu_custom_call.1} parent=1 // pred_fallthru
      _
    // Predicated region
    $region10: #{tpu_custom_call.1} parent=1 // pred_check
      _
    $region11: #{tpu_custom_call.1} parent=1 // pred_check_branch
      %25 = sbr.rel (0) target = $region13
    $region12: #{tpu_custom_call.1} parent=1 // pred_region
      _
    $region13: #{tpu_custom_call.1} parent=1 // pred_fallthru
      _
    // Predicated region
    $region14: #{tpu_custom_call.1} parent=1 // pred_check
      _
    $region15: #{tpu_custom_call.1} parent=1 // pred_check_branch
      %27 = sbr.rel (0) target = $region17
    $region16: #{tpu_custom_call.1} parent=1 // pred_region
      _
    $region17: #{tpu_custom_call.1} parent=1 // pred_fallthru
      _
    // Predicated region
    $region18: #{tpu_custom_call.1} parent=1 // pred_check
      _
    $region19: #{tpu_custom_call.1} parent=1 // pred_check_branch
      %29 = sbr.rel (0) target = $region21
    $region20: #{tpu_custom_call.1} parent=1 // pred_region
      _
    $region21: #{tpu_custom_call.1} parent=1 // pred_fallthru
      _
    // Predicated region
    $region22: #{tpu_custom_call.1} parent=1 // pred_check
      _
    $region23: #{tpu_custom_call.1} parent=1 // pred_check_branch
      %31 = sbr.rel (0) target = $region25
    $region24: #{tpu_custom_call.1} parent=1 // pred_region
      %32 = dma.done [#allocation4], 64
    $region25: #{tpu_custom_call.1} parent=1 // pred_fallthru
      _
    %v33 = vld [vmem:[#allocation3] sm:$0xf]
    %v34 = vld [vmem:[%s2] sm:$0x3]
    %v36 = vlaneseq
    %v37 = vshrl.u32 %v36, 7
    %v38 = vsub.s32 0, %v37
    %v39 = vrot.slane %v34, %v38
    %v40 = vlaneseq
    %v41 = vshrl.u32 %v40, 7
    %v42 = vsub.s32 1, %v41
    %v43 = vrot.slane %v34, %v42
    %v44 = vcombine.low %v39, %v43
    %v46 = vunpack.c.l.s4 1983009808
    %v47 = vunpack.c.0.s8 %v46
    %v48 = vlaneseq
    %v49 = vshrl.u32 %v48, 7
    %v50 = vsub.s32 %v47, %v49
    %v51 = vrot.slane %v44, %v50
    %v53 = vmul.f32 %v33, %v51
    %v56 = vunpack.c.l.s4 1983009808
    %v57 = vunpack.c.0.s8 %v56
    %v58 = vlaneseq
    %v59 = vshrl.u32 %v58, 7
    %v60 = vsub.s32 %v57, %v59
    %v61 = vrot.slane %v53, %v60
    %v62 = vcombine.high %v61, %v61
    %vm65 = vcmask 1041408
    %v66 = vsel %vm65, %v61, 0.0
    %v67 = vsel %vm65, %v62, 0.0
    %v68 = vadd.f32 %v66, %v67
    %69 = vadd.xlane.f32.xlu0 %v68
    %v70 = vpop.xlane.xlu0 %69
    %v71 = vld [vmem:[%s1] sm:$0x3]
    %v72 = vsub.f32 1.0, %v71
    %v73 = vld [vmem:[%s3] sm:$0x1]
    %v75 = vlaneseq
    %v76 = vshrl.u32 %v75, 7
    %v77 = vsub.s32 0, %v76
    %v78 = vrot.slane %v73, %v77
    %v80 = vmul.f32 %v72, %v78
    %vm81 = vcmask 58368
    %v82 = vsel %vm81, %v80, 0.0
    %83 = vadd.xlane.f32.xlu0 %v82
    %v84 = vpop.xlane.xlu0 %83
    %v85 = vadd.f32 %v70, %v84
    %s86 = sld [smem:[#allocation2]]
    %v87 = vstv %s86
    %v88 = vadd.f32 %v85, %v87
    %vm89 = vcmask 1024
    %90 = vst.msk [vmem:[%s5] sm:$0x3] %vm89, %v88
    // Predicated region
    $region26: #{tpu_custom_call.1} parent=1 // pred_check
      _
    $region27: #{tpu_custom_call.1} parent=1 // pred_check_branch
      %92 = sbr.rel (0) target = $region29
    $region28: #{tpu_custom_call.1} parent=1 // pred_region
      _
    $region29: #{tpu_custom_call.1} parent=1 // pred_fallthru
      _
    // Predicated region
    $region30: #{tpu_custom_call.1} parent=1 // pred_check
      _
    $region31: #{tpu_custom_call.1} parent=1 // pred_check_branch
      %94 = sbr.rel (0) target = $region33
    $region32: #{tpu_custom_call.1} parent=1 // pred_region
      _
    $region33: #{tpu_custom_call.1} parent=1 // pred_fallthru
      _
    %95 = vsyncpa [#allocation4], 1

</llo_original>
